<compile_context>
chip_gen: v5e
topology: v5e:2x2
jax: 0.10.0
libtpu: 0.0.40
codegen_flags: <defaults>
</compile_context>

<pallas_src>
import jax
import jax.numpy as jnp
from jax import lax
from jax.experimental import pallas as pl
from jax.experimental.pallas import tpu as pltpu

LANES = 128
SUBLANES = 8
GRAIN = SUBLANES * LANES     # 1024: bulk/tail split granularity (zero-copy reshape)
MAX_ROW_BLOCK = 4096         # (4096,128) f32 = 2 MiB per input per grid step
CHUNK_ROWS = 64              # inner-loop slice: (64,128) f32 = 8 vregs per temp


def _cdiv(a, b):
    return -(-a // b)


def _bce_terms(p, t):
    """Per-element BCE with torch's -100 clamp on each log term."""
    p = p.astype(jnp.float32)
    t = t.astype(jnp.float32)
    log_p = jnp.maximum(jnp.log(p), -100.0)
    log_1mp = jnp.maximum(jnp.log(1.0 - p), -100.0)
    # -(t*log(p) + (1-t)*log(1-p)), rewritten with one fewer mul/sub.
    return -(log_1mp + t * (log_p - log_1mp))


def _make_kernel(total_rows, row_block, chunk_rows, needs_mask):
    """Kernel accumulating BCE partial sums into a resident (8,128) f32 block."""
    n_chunks = row_block // chunk_rows

    def kernel(p_ref, t_ref, out_ref):
        step = pl.program_id(0)

        @pl.when(step == 0)
        def _():
            out_ref[...] = jnp.zeros_like(out_ref)

        if needs_mask:
            # Hoisted: loop-invariant row iota + rows remaining in this block.
            row_iota = lax.broadcasted_iota(jnp.int32, (chunk_rows, LANES), 0)
            block_rows_left = total_rows - step * row_block

        def body(c, carry):
            r0 = pl.multiple_of(c * chunk_rows, chunk_rows)
            p = p_ref[pl.ds(r0, chunk_rows), :]
            t = t_ref[pl.ds(r0, chunk_rows), :]
            if needs_mask:
                # Mask stale rows of a ragged edge block BEFORE the logs:
                # (p=1, t=1) contributes exactly 0 and can never produce NaN.
                valid = row_iota < (block_rows_left - r0)
                p = jnp.where(valid, p.astype(jnp.float32), 1.0)
                t = jnp.where(valid, t.astype(jnp.float32), 1.0)
            elem = _bce_terms(p, t)
            # (chunk,128) -> (8,128): pure elementwise vreg adds, no relayout.
            out_ref[...] += elem.reshape(chunk_rows // SUBLANES, SUBLANES, LANES).sum(axis=0)
            return carry

        lax.fori_loop(0, n_chunks, body, 0)

    return kernel


def bce_loss(prediction, target):
    """BCE loss with mean reduction, matching torch.nn.BCELoss(reduction='mean')."""
    assert prediction.shape == target.shape
    n = prediction.size
    if n == 0:
        # torch returns nan for empty input with reduction='mean'.
        return jnp.float32(jnp.nan)

    flat_p = prediction.reshape(-1)
    flat_t = target.reshape(-1)

    bulk_n = (n // GRAIN) * GRAIN
    total = jnp.float32(0.0)

    if bulk_n > 0:
        rows = bulk_n // LANES                       # multiple of 8
        if rows >= MAX_ROW_BLOCK:
            row_block = MAX_ROW_BLOCK
            chunk_rows = CHUNK_ROWS
        else:
            row_block = rows                         # single grid step, exact
            chunk_rows = CHUNK_ROWS if rows % CHUNK_ROWS == 0 else SUBLANES
        grid = _cdiv(rows, row_block)
        needs_mask = (rows % row_block) != 0         # only a ragged last block needs it

        # Zero-copy when n is 1024-aligned (identity slice + contiguous reshape);
        # otherwise the bulk slice is at most one pass, never a pad of both arrays.
        p2 = flat_p[:bulk_n].reshape(rows, LANES)
        t2 = flat_t[:bulk_n].reshape(rows, LANES)

        partial = pl.pallas_call(
            _make_kernel(rows, row_block, chunk_rows, needs_mask),
            out_shape=jax.ShapeDtypeStruct((SUBLANES, LANES), jnp.float32),
            grid=(grid,),
            in_specs=[
                pl.BlockSpec((row_block, LANES), lambda i: (i, 0)),
                pl.BlockSpec((row_block, LANES), lambda i: (i, 0)),
            ],
            out_specs=pl.BlockSpec((SUBLANES, LANES), lambda i: (0, 0)),
            # TODO(synk): on v7x, shard the row range across the 2 TensorCores
            # (pltpu.CORE_PARALLEL leading axis or pl.core_map) — EUP becomes the
            # binding slot at 3.2 TB/s and the 2-TC split is the remaining 2x.
            compiler_params=pltpu.CompilerParams(
                dimension_semantics=("arbitrary",),
            ),
        )(p2, t2)
        total = total + jnp.sum(partial)

    tail_n = n - bulk_n
    if tail_n > 0:
        # Sub-1024-element ragged tail: cheaper in plain JAX than padding both
        # full arrays just to make it tileable.
        total = total + jnp.sum(_bce_terms(flat_p[bulk_n:], flat_t[bulk_n:]))

    return total / jnp.float32(n)


if __name__ == "__main__":
    key = jax.random.PRNGKey(0)
    k1, k2 = jax.random.split(key)
    # Small NCHW-like shapes: batch=2, channels=4, spatial=16x16 (n=2048, 1024-aligned).
    shape = (2, 4, 16, 16)
    prediction = jax.nn.sigmoid(jax.random.normal(k1, shape, jnp.float32))
    target = (jax.random.uniform(k2, shape) > 0.5).astype(jnp.float32)

    loss = bce_loss(prediction, target)
    jax.block_until_ready(loss)

    # Reference check in plain JAX (same clamping semantics as torch BCELoss).
    log_p = jnp.maximum(jnp.log(prediction), -100.0)
    log_1mp = jnp.maximum(jnp.log(1.0 - prediction), -100.0)
    ref = jnp.mean(-(target * log_p + (1.0 - target) * log_1mp))
    assert jnp.allclose(loss, ref, rtol=1e-5, atol=1e-6), (loss, ref)

    print("KERNEL_OK")
</pallas_src>

<mosaic_0001>
module attributes {stable_mosaic.version = 11 : i64} {
  func.func @kernel(%arg0: i32, %arg1: memref<16x128xf32, #tpu.memory_space<vmem>>, %arg2: memref<16x128xf32, #tpu.memory_space<vmem>>, %arg3: memref<8x128xf32, #tpu.memory_space<vmem>>) attributes {dimension_semantics = [#tpu.dimension_semantics<arbitrary>], iteration_bounds = array<i64: 1>, scalar_prefetch = 0 : i64, scratch_operands = 0 : i64, tpu.core_type = #tpu.core_type<tc>, window_params = [{transform_indices = @transform_0, window_bounds = array<i64: 16, 128>}, {transform_indices = @transform_1, window_bounds = array<i64: 16, 128>}, {pipeline_mode = #tpu.pipeline_mode<synchronous>, transform_indices = @transform_2, window_bounds = array<i64: 8, 128>}]} {
    %c0_i32 = arith.constant 0 : i32
    %0 = arith.cmpi eq, %arg0, %c0_i32 : i32
    %1 = arith.extui %0 : i1 to i32
    %c0_i32_0 = arith.constant 0 : i32
    %2 = arith.cmpi ne, %1, %c0_i32_0 : i32
    scf.if %2 {
      %cst = arith.constant 0.000000e+00 : f32
      %4 = vector.broadcast %cst : f32 to vector<8x128xf32>
      %c0 = arith.constant 0 : index
      %c0_3 = arith.constant 0 : index
      %5 = vector.load %arg3[%c0, %c0_3] : memref<8x128xf32, #tpu.memory_space<vmem>>, vector<8x128xf32>
      tpu.vector_store %arg3[%c0, %c0_3], %4 {strides = array<i32>} : memref<8x128xf32, #tpu.memory_space<vmem>>, vector<8x128xf32>,
    } else {
    }
    %c0_i32_1 = arith.constant 0 : i32
    %c2_i32 = arith.constant 2 : i32
    %3 = arith.addi %c0_i32_1, %c2_i32 : i32
    %c1_i32 = arith.constant 1 : i32
    scf.for %arg4 = %c0_i32_1 to %3 step %c1_i32  : i32 {
      %c8_i32 = arith.constant 8 : i32
      %4 = arith.muli %arg4, %c8_i32 : i32
      %5 = tpu.assume_multiple %4, 8 : i32
      %6 = arith.index_cast %5 : i32 to index
      %c0 = arith.constant 0 : index
      %7 = vector.load %arg1[%6, %c0] : memref<16x128xf32, #tpu.memory_space<vmem>>, vector<8x128xf32>
      %8 = arith.index_cast %5 : i32 to index
      %c0_3 = arith.constant 0 : index
      %9 = vector.load %arg2[%8, %c0_3] : memref<16x128xf32, #tpu.memory_space<vmem>>, vector<8x128xf32>
      %10 = math.log %7 : vector<8x128xf32>
      %cst = arith.constant -1.000000e+02 : f32
      %11 = vector.broadcast %cst : f32 to vector<8x128xf32>
      %12 = arith.maximumf %10, %11 : vector<8x128xf32>
      %cst_4 = arith.constant 1.000000e+00 : f32
      %13 = vector.broadcast %cst_4 : f32 to vector<8x128xf32>
      %14 = arith.subf %13, %7 : vector<8x128xf32>
      %15 = math.log %14 : vector<8x128xf32>
      %cst_5 = arith.constant -1.000000e+02 : f32
      %16 = vector.broadcast %cst_5 : f32 to vector<8x128xf32>
      %17 = arith.maximumf %15, %16 : vector<8x128xf32>
      %18 = arith.subf %12, %17 : vector<8x128xf32>
      %19 = arith.mulf %9, %18 : vector<8x128xf32>
      %20 = arith.addf %17, %19 : vector<8x128xf32>
      %cst_6 = arith.constant 0.000000e+00 : f32
      %21 = vector.broadcast %cst_6 : f32 to vector<8x128xf32>
      %22 = arith.subf %21, %20 : vector<8x128xf32>
      %c0_7 = arith.constant 0 : index
      %c0_8 = arith.constant 0 : index
      %23 = vector.load %arg3[%c0_7, %c0_8] : memref<8x128xf32, #tpu.memory_space<vmem>>, vector<8x128xf32>
      %24 = vector.shape_cast %22 : vector<8x128xf32> to vector<1x8x128xf32>
      %cst_9 = arith.constant dense<0.000000e+00> : vector<8x128xf32>
      %25 = vector.multi_reduction <add>, %24, %cst_9 [0] : vector<1x8x128xf32> to vector<8x128xf32>
      %26 = arith.addf %23, %25 : vector<8x128xf32>
      %c0_10 = arith.constant 0 : index
      %c0_11 = arith.constant 0 : index
      %27 = vector.load %arg3[%c0_10, %c0_11] : memref<8x128xf32, #tpu.memory_space<vmem>>, vector<8x128xf32>
      tpu.vector_store %arg3[%c0_10, %c0_11], %26 {strides = array<i32>} : memref<8x128xf32, #tpu.memory_space<vmem>>, vector<8x128xf32>,
    }
    %c2_i32_2 = arith.constant 2 : i32
    return
  }
  func.func @transform_0(%arg0: i32) -> (i32, i32) {
    %c0_i32 = arith.constant 0 : i32
    %c0_i32_0 = arith.constant 0 : i32
    return %arg0, %c0_i32 : i32, i32
  }
  func.func @transform_1(%arg0: i32) -> (i32, i32) {
    %c0_i32 = arith.constant 0 : i32
    %c0_i32_0 = arith.constant 0 : i32
    return %arg0, %c0_i32 : i32, i32
  }
  func.func @transform_2(%arg0: i32) -> (i32, i32) {
    %c0_i32 = arith.constant 0 : i32
    %c0_i32_0 = arith.constant 0 : i32
    %c0_i32_1 = arith.constant 0 : i32
    return %c0_i32, %c0_i32_0 : i32, i32
  }
}

</mosaic_0001>

<llo_original>
// kernel: tpu_custom_call.1
$region0: #{tpu_custom_call.1}
  #allocation0 [shape = 'u32[]', space=smem, size = 0x4, offset = 0x4, fixed_abs, tag = 'smem constant byte address 0x4 - core index']
  #allocation1 [shape = 'u32[72,128]{1,0:T(1,128)}', space=vmem, size = 0x9000, scoped, tag = 'internal scratch']
  %s0 = inlined_call_operand.hbm [shape: f32[16,128], index: 0, kind: input, shape index: {}]
  %s1 = inlined_call_operand.hbm [shape: f32[16,128], index: 1, kind: input, shape index: {}]
  %s2 = inlined_call_operand.hbm [shape: f32[8,128], index: 2, kind: output, shape index: {}]
  %s3 = sld [smem:[#allocation0]]
  $region37: #{tpu_custom_call.1} parent=0
    _
  %s5 = ssub.s32 1, %s3
  %s6 = scalar_select 0, %s5, %s3
  $region1: #{tpu_custom_call.1} parent=0
    #allocation2 [shape = 'u8[8192]{0}', space=vmem, size = 0x2000, scoped, tag = 'input window, operand 0, single buffered']
    #allocation3 [shape = 's32[1]{0}', space=sflag, size = 0x4, scoped, tag = 'scoped memory for tpu_custom_call.1']
    #allocation4 [shape = 's32[1]{0}', space=sflag, size = 0x4, scoped, tag = 'scoped memory for tpu_custom_call.1']
    #allocation5 [shape = 'u8[8192]{0}', space=vmem, size = 0x2000, scoped, tag = 'input window, operand 1, single buffered']
    #allocation6 [shape = 's32[1]{0}', space=sflag, size = 0x4, scoped, tag = 'scoped memory for tpu_custom_call.1']
    #allocation7 [shape = 'u8[4096]{0}', space=vmem, size = 0x1000, scoped, tag = 'output window, operand 0, single buffered']
    %7 = vsyncpa [#allocation3], 0
    %8 = vsyncpa [#allocation6], 0
    %9 = vsyncpa [#allocation4], 0
    // Predicated region
    $region2: #{tpu_custom_call.1} parent=1 // pred_check
      _
    $region3: #{tpu_custom_call.1} parent=1 // pred_check_branch
      %11 = sbr.rel (0) target = $region5
    $region4: #{tpu_custom_call.1} parent=1 // pred_region
      %13 = vsyncadd [#allocation3], 0
      %s14 = sshll.u32 %s0, 4
      %s15 = int_to_ptr.hbm [resolvable:$true] %s14
      %s16 = sshll.u32 [#allocation2], 4
      %s17 = int_to_ptr.vmem [resolvable:$true] %s16
      %22 = dma.hbm_to_vmem [thread:$0]  %s15, 256, %s17, [#allocation3], 128, 128, 8
    $region5: #{tpu_custom_call.1} parent=1 // pred_fallthru
      _
    // Predicated region
    $region6: #{tpu_custom_call.1} parent=1 // pred_check
      _
    $region7: #{tpu_custom_call.1} parent=1 // pred_check_branch
      %24 = sbr.rel (0) target = $region9
    $region8: #{tpu_custom_call.1} parent=1 // pred_region
      %26 = vsyncadd [#allocation6], 0
      %s27 = sshll.u32 %s1, 4
      %s28 = int_to_ptr.hbm [resolvable:$true] %s27
      %s29 = sshll.u32 [#allocation5], 4
      %s30 = int_to_ptr.vmem [resolvable:$true] %s29
      %35 = dma.hbm_to_vmem [thread:$0]  %s28, 256, %s30, [#allocation6], 128, 128, 8
    $region9: #{tpu_custom_call.1} parent=1 // pred_fallthru
      _
    // Predicated region
    $region10: #{tpu_custom_call.1} parent=1 // pred_check
      _
    $region11: #{tpu_custom_call.1} parent=1 // pred_check_branch
      %37 = sbr.rel (0) target = $region13
    $region12: #{tpu_custom_call.1} parent=1 // pred_region
      %39 = dma.done [#allocation3], 256
    $region13: #{tpu_custom_call.1} parent=1 // pred_fallthru
      _
    // Predicated region
    $region14: #{tpu_custom_call.1} parent=1 // pred_check
      _
    $region15: #{tpu_custom_call.1} parent=1 // pred_check_branch
      %41 = sbr.rel (0) target = $region17
    $region16: #{tpu_custom_call.1} parent=1 // pred_region
      %43 = dma.done [#allocation6], 256
    $region17: #{tpu_custom_call.1} parent=1 // pred_fallthru
      _
    %p44 = scmp.eq.s32.totalorder 0, 0
    // Predicated region
    $region18: #{tpu_custom_call.1} parent=1 // pred_check
      %p45 = pneg %p44
    $region19: #{tpu_custom_call.1} parent=1 // pred_check_branch
      %47 = sbr.rel (%p45) target = $region21
    $region20: #{tpu_custom_call.1} parent=1 // pred_region
      %48 = vst [vmem:[#allocation7] sm:$0xff] 0.0
    $region21: #{tpu_custom_call.1} parent=1 // pred_fallthru
      _
    loop: start=0, step=1, limit=2
    $region22: #{tpu_custom_call.1} parent=1 // loop_pre_header
      _
    $region23: #{tpu_custom_call.1} parent=1 // loop_header
      %s50 = sphi 0, %s54
      %p51 = scmp.ge.s32.totalorder %s50, 2
    $region24: #{tpu_custom_call.1} parent=1 // loop_header_branch
      %53 = sbr.rel (%p51) target = $region28
    $region25: #{tpu_custom_call.1} parent=1 // loop_body
      %s55 = smul.u32 %s50, 8
      %s56 = scalar_lea.vmem [#allocation2], %s55
      %v57 = vld [vmem:[%s56] sm:$0xff]
      %s58 = scalar_lea.vmem [#allocation5], %s55
      %v59 = vld [vmem:[%s58] sm:$0xff]
      %v60 = vlog2.pop %v57
      %v61 = vmul.f32 %v60, 0.6931472
      %v62 = vmax.f32 %v61, -100.0
      %v63 = vsub.f32 1.0, %v57
      %v64 = vlog2.pop %v63
      %v65 = vmul.f32 %v64, 0.6931472
      %v66 = vmax.f32 %v65, -100.0
      %v67 = vsub.f32 %v62, %v66
      %v68 = vmul.f32 %v59, %v67
      %v69 = vadd.f32 %v66, %v68
      %v70 = vsub.f32 0.0, %v69
      %v71 = vld [vmem:[#allocation7] sm:$0xff]
      %v72 = vadd.f32 %v70, 0.0
      %v73 = vadd.f32 %v71, %v72
      %74 = vst [vmem:[#allocation7] sm:$0xff] %v73
    $region26: #{tpu_custom_call.1} parent=1 // loop_footer
      %s54 = sadd.s32 1, %s50
    $region27: #{tpu_custom_call.1} parent=1 // loop_footer_branch
      %49 = sbr.rel target = $region23
    $region28: #{tpu_custom_call.1} parent=1 // loop_exit
      _
    // Predicated region
    $region29: #{tpu_custom_call.1} parent=1 // pred_check
      _
    $region30: #{tpu_custom_call.1} parent=1 // pred_check_branch
      %76 = sbr.rel (0) target = $region32
    $region31: #{tpu_custom_call.1} parent=1 // pred_region
      %78 = vsyncadd [#allocation4], 0
      %s80 = sshll.u32 [#allocation7], 4
      %s81 = int_to_ptr.vmem [resolvable:$true] %s80
      %s82 = sshll.u32 %s2, 4
      %s83 = int_to_ptr.hbm [resolvable:$true] %s82
      %85 = dma.vmem_to_hbm [thread:$0]  %s81, 128, %s83, [#allocation4]
    $region32: #{tpu_custom_call.1} parent=1 // pred_fallthru
      _
    // Predicated region
    $region33: #{tpu_custom_call.1} parent=1 // pred_check
      _
    $region34: #{tpu_custom_call.1} parent=1 // pred_check_branch
      %87 = sbr.rel (0) target = $region36
    $region35: #{tpu_custom_call.1} parent=1 // pred_region
      %89 = dma.done [#allocation4], 128
    $region36: #{tpu_custom_call.1} parent=1 // pred_fallthru
      _
    %90 = vsyncpa [#allocation3], 1
    %91 = vsyncpa [#allocation6], 1
    %92 = vsyncpa [#allocation4], 1

</llo_original>
